<compile_context>
chip_gen: v7x
topology: tpu7x:2x2x1
jax: 0.10.0
libtpu: 0.0.40
codegen_flags: <defaults>
</compile_context>

<pallas_src>
import jax
import jax.numpy as jnp
from jax import lax
from jax.experimental import pallas as pl
from jax.experimental.pallas import tpu as pltpu

D_PAD = 128   # hidden width padded to a full 128-lane register
C_PAD = 128   # classifier width padded for an unmasked, lane-dense store


def make_rnn_classify_kernel(L, Bb):
    def kernel(tok_ref, table_ref, wih_ref, whh_ref, bias_ref, wc_ref, bc_ref,
               out_ref, pre_ref):
        # tok_ref  : (L*Bb, 1) int32 tokens of this batch tile, time-major flattened
        # table_ref: (V, D_PAD) bf16 embedding table (row 0 == 0 -> padding_idx=0)
        # wih_ref  : (D_PAD, D_PAD) bf16 pre-transposed W_ih
        # whh_ref  : (D_PAD, D_PAD) f32 pre-transposed W_hh (recurrence kept f32)
        # bias_ref : (1, D_PAD) f32 fused b_ih + b_hh
        # wc_ref   : (D_PAD, C_PAD) bf16 zero-padded classifier weight
        # bc_ref   : (1, C_PAD) f32 zero-padded classifier bias
        # out_ref  : (Bb, C_PAD) f32
        # pre_ref  : (L, Bb, D_PAD) f32 VMEM scratch with the hoisted projection
        V, Dp = table_ref.shape

        # --- in-kernel embedding "gather" as a one-hot bf16 MXU matmul ---------
        # TODO(synk): for realistic vocabularies (V >> 128) replace the one-hot
        # matmul with a scalar-prefetched row gather from an HBM-resident table.
        toks = tok_ref[...]                                             # (L*Bb, 1)
        onehot = (lax.broadcasted_iota(jnp.int32, (L * Bb, V), 1) == toks
                  ).astype(jnp.bfloat16)                                # (L*Bb, V)
        emb = jnp.dot(onehot, table_ref[...],
                      preferred_element_type=jnp.float32)               # (L*Bb, Dp)
        emb = emb.astype(jnp.bfloat16)          # exact: each value is a bf16 table entry

        # --- hoisted input projection + fused bias: ONE matmul, outside the loop
        pre = jnp.dot(emb, wih_ref[...],
                      preferred_element_type=jnp.float32) + bias_ref[...]
        pre_ref[...] = pre.reshape(L, Bb, Dp)                           # time-major

        # --- serial recurrence in f32; W_hh loaded once, loop fully unrolled ---
        # TODO(synk): weight-stationary MXU (pltpu.matmul_push_rhs/acc_lhs/pop)
        # would avoid re-staging W_hh each step; kept on jnp.dot for portability.
        # TODO(synk): for long L use partial unroll (2..4) and an 'arbitrary'
        # L-chunk grid axis with h carried in scratch so pre is never fully resident.
        whh = whh_ref[...]

        def step(t, h):
            # per-step critical path: 1 MXU matmul + 1 VPU add + tanh (EUP)
            return jnp.tanh(pre_ref[t]
                            + jnp.dot(h, whh, preferred_element_type=jnp.float32))

        h = lax.fori_loop(0, L, step, jnp.zeros((Bb, Dp), jnp.float32),
                          unroll=True)

        # --- lane-dense classifier store (padded columns are exactly zero) -----
        out_ref[...] = (jnp.dot(h.astype(jnp.bfloat16), wc_ref[...],
                                preferred_element_type=jnp.float32)
                        + bc_ref[...]).astype(out_ref.dtype)

    return kernel


def init_params(key, vocab_size, vector_dim, num_classes):
    ks = jax.random.split(key, 7)
    scale = 0.1
    embedding = scale * jax.random.normal(ks[0], (vocab_size, vector_dim), jnp.float32)
    embedding = embedding.at[0].set(0.0)          # padding_idx=0
    w_ih = scale * jax.random.normal(ks[1], (vector_dim, vector_dim), jnp.float32)
    w_hh = scale * jax.random.normal(ks[2], (vector_dim, vector_dim), jnp.float32)
    b_ih = scale * jax.random.normal(ks[3], (vector_dim,), jnp.float32)
    b_hh = scale * jax.random.normal(ks[4], (vector_dim,), jnp.float32)
    w_c = scale * jax.random.normal(ks[5], (num_classes, vector_dim), jnp.float32)
    b_c = scale * jax.random.normal(ks[6], (num_classes,), jnp.float32)
    return dict(embedding=embedding, w_ih=w_ih, w_hh=w_hh, b_ih=b_ih,
                b_hh=b_hh, w_c=w_c, b_c=b_c)


@jax.jit
def torch_model_forward(tokens, params):
    """tokens: (B, L) int -> logits (B, num_classes). TorchModel forward, y=None."""
    B, L = tokens.shape
    V, D = params["embedding"].shape
    C = params["w_c"].shape[0]
    assert D <= D_PAD and C <= C_PAD

    # Batch tiling: one grid step per TensorCore. Pad B to a sublane multiple;
    # only split into 2 tiles (v7x megacore) when each tile still fills MXU rows.
    B_pad = ((B + 7) // 8) * 8
    nb = 2 if B_pad >= 256 else 1
    Bb = B_pad // nb

    # --- wrapper glue (fused under jit): pad D/C to 128 lanes, cast the
    # non-recurrent matmul weights to bf16 (recurrence W_hh stays f32) ---------
    table = (jnp.zeros((V, D_PAD), jnp.float32)
             .at[:, :D].set(params["embedding"])).astype(jnp.bfloat16)
    wih = (jnp.zeros((D_PAD, D_PAD), jnp.float32)
           .at[:D, :D].set(params["w_ih"].T)).astype(jnp.bfloat16)
    whh = jnp.zeros((D_PAD, D_PAD), jnp.float32).at[:D, :D].set(params["w_hh"].T)
    bias = (jnp.zeros((1, D_PAD), jnp.float32)
            .at[:, :D].set((params["b_ih"] + params["b_hh"])[None, :]))
    wc = (jnp.zeros((D_PAD, C_PAD), jnp.float32)
          .at[:D, :C].set(params["w_c"].T)).astype(jnp.bfloat16)
    bc = jnp.zeros((1, C_PAD), jnp.float32).at[:, :C].set(params["b_c"][None, :])

    # Tokens -> (nb, L*Bb, 1), time-major inside each batch tile, so every
    # per-timestep slice pre_ref[t] in the kernel is a contiguous (Bb, D_PAD) tile.
    toks = jnp.zeros((B_pad, L), jnp.int32).at[:B].set(tokens.astype(jnp.int32))
    toks = jnp.transpose(toks.reshape(nb, Bb, L), (0, 2, 1)).reshape(nb, L * Bb, 1)

    kernel = make_rnn_classify_kernel(L, Bb)
    full = lambda shape: pl.BlockSpec(shape, lambda b: (0,) * len(shape))

    logits_pad = pl.pallas_call(
        kernel,
        out_shape=jax.ShapeDtypeStruct((B_pad, C_PAD), jnp.float32),
        grid_spec=pltpu.PrefetchScalarGridSpec(
            num_scalar_prefetch=0,
            grid=(nb,),                                        # batch tiles (usually 1)
            in_specs=[
                pl.BlockSpec((None, L * Bb, 1), lambda b: (b, 0, 0)),  # tokens
                full((V, D_PAD)),                              # embedding table (bf16)
                full((D_PAD, D_PAD)),                          # W_ih^T (bf16)
                full((D_PAD, D_PAD)),                          # W_hh^T (f32)
                full((1, D_PAD)),                              # b_ih + b_hh
                full((D_PAD, C_PAD)),                          # W_c^T (bf16, padded)
                full((1, C_PAD)),                              # b_c  (padded)
            ],
            out_specs=pl.BlockSpec((Bb, C_PAD), lambda b: (b, 0)),
            scratch_shapes=[pltpu.VMEM((L, Bb, D_PAD), jnp.float32)],
        ),
        compiler_params=pltpu.CompilerParams(
            dimension_semantics=("parallel",),                 # megacore over batch
            vmem_limit_bytes=32 * 1024 * 1024),                # tiny footprint, well under
    )(toks, table, wih, whh, bias, wc, bc)

    # TODO(synk): training path (CrossEntropyLoss when y is given) not implemented;
    # only the inference forward (y_pred) is.
    return logits_pad[:B, :C]


def reference_forward(tokens, params):
    emb = jnp.take(params["embedding"], tokens, axis=0)
    B, L, D = emb.shape
    h = jnp.zeros((B, D), jnp.float32)
    for t in range(L):
        h = jnp.tanh(emb[:, t, :] @ params["w_ih"].T + params["b_ih"]
                     + h @ params["w_hh"].T + params["b_hh"])
    return h @ params["w_c"].T + params["b_c"]


if __name__ == "__main__":
    vocab_size = 16        # len(vocab)
    vector_dim = 32
    sentence_length = 8
    num_classes = 4
    batch = 8

    key = jax.random.PRNGKey(0)
    pkey, xkey = jax.random.split(key)
    params = init_params(pkey, vocab_size, vector_dim, num_classes)

    tokens = jax.random.randint(xkey, (batch, sentence_length), 0, vocab_size,
                                dtype=jnp.int32)

    y_pred = jax.block_until_ready(torch_model_forward(tokens, params))

    y_ref = reference_forward(tokens, params)
    assert y_pred.shape == (batch, num_classes)
    # bf16 weights on the non-recurrent MXU matmuls give ~1e-3 abs deviation vs
    # the pure-f32 reference; the recurrence itself is kept in f32.
    assert jnp.allclose(y_pred, y_ref, atol=1e-2, rtol=1e-2), (
        float(jnp.max(jnp.abs(y_pred - y_ref))))

    print("KERNEL_OK")
</pallas_src>

<mosaic_0001>
module attributes {stable_mosaic.version = 11 : i64} {
  func.func @kernel(%arg0: i32, %arg1: memref<1x64x1xi32, #tpu.memory_space<vmem>>, %arg2: memref<16x128xbf16, #tpu.memory_space<vmem>>, %arg3: memref<128x128xbf16, #tpu.memory_space<vmem>>, %arg4: memref<128x128xf32, #tpu.memory_space<vmem>>, %arg5: memref<1x128xf32, #tpu.memory_space<vmem>>, %arg6: memref<128x128xbf16, #tpu.memory_space<vmem>>, %arg7: memref<1x128xf32, #tpu.memory_space<vmem>>, %arg8: memref<8x128xf32, #tpu.memory_space<vmem>>, %arg9: memref<8x8x128xf32, #tpu.memory_space<vmem>>) attributes {dimension_semantics = [#tpu.dimension_semantics<parallel>], iteration_bounds = array<i64: 1>, scalar_prefetch = 0 : i64, scratch_operands = 1 : i64, tpu.core_type = #tpu.core_type<tc>, window_params = [{transform_indices = @transform_0, window_bounds = array<i64: 1, 64, 1>}, {pipeline_mode = #tpu.pipeline_mode<synchronous>, transform_indices = @transform_1, window_bounds = array<i64: 16, 128>}, {pipeline_mode = #tpu.pipeline_mode<synchronous>, transform_indices = @transform_2, window_bounds = array<i64: 128, 128>}, {pipeline_mode = #tpu.pipeline_mode<synchronous>, transform_indices = @transform_3, window_bounds = array<i64: 128, 128>}, {pipeline_mode = #tpu.pipeline_mode<synchronous>, transform_indices = @transform_4, window_bounds = array<i64: 1, 128>}, {pipeline_mode = #tpu.pipeline_mode<synchronous>, transform_indices = @transform_5, window_bounds = array<i64: 128, 128>}, {pipeline_mode = #tpu.pipeline_mode<synchronous>, transform_indices = @transform_6, window_bounds = array<i64: 1, 128>}, {transform_indices = @transform_7, window_bounds = array<i64: 8, 128>}]} {
    %c0 = arith.constant 0 : index
    %c0_0 = arith.constant 0 : index
    %c0_1 = arith.constant 0 : index
    %0 = vector.load %arg1[%c0, %c0_0, %c0_1] : memref<1x64x1xi32, #tpu.memory_space<vmem>>, vector<1x64x1xi32>
    %1 = vector.shape_cast %0 : vector<1x64x1xi32> to vector<64x1xi32>
    %2 = tpu.iota {dimensions = array<i32: 1>} : vector<64x16xi32>
    %3 = vector.broadcast %1 : vector<64x1xi32> to vector<64x16xi32>
    %4 = arith.cmpi eq, %2, %3 : vector<64x16xi32>
    %5 = arith.extui %4 : vector<64x16xi1> to vector<64x16xi32>
    %6 = arith.sitofp %5 : vector<64x16xi32> to vector<64x16xf32>
    %7 = arith.truncf %6 : vector<64x16xf32> to vector<64x16xbf16>
    %c0_2 = arith.constant 0 : index
    %c0_3 = arith.constant 0 : index
    %8 = vector.load %arg2[%c0_2, %c0_3] : memref<16x128xbf16, #tpu.memory_space<vmem>>, vector<16x128xbf16>
    %cst = arith.constant dense<0.000000e+00> : vector<64x128xf32>
    %9 = tpu.matmul %7, %8, %cst {dimension_numbers = #tpu.dot_dimension_numbers<[1], [0], [0], [1], [0, 0, 1, 1], [], []>} : vector<64x16xbf16>, vector<16x128xbf16>, vector<64x128xf32> -> vector<64x128xf32>
    %10 = arith.truncf %9 : vector<64x128xf32> to vector<64x128xbf16>
    %c0_4 = arith.constant 0 : index
    %c0_5 = arith.constant 0 : index
    %11 = vector.load %arg3[%c0_4, %c0_5] : memref<128x128xbf16, #tpu.memory_space<vmem>>, vector<128x128xbf16>
    %cst_6 = arith.constant dense<0.000000e+00> : vector<64x128xf32>
    %12 = tpu.matmul %10, %11, %cst_6 {dimension_numbers = #tpu.dot_dimension_numbers<[1], [0], [0], [1], [0, 0, 1, 1], [], []>} : vector<64x128xbf16>, vector<128x128xbf16>, vector<64x128xf32> -> vector<64x128xf32>
    %c0_7 = arith.constant 0 : index
    %c0_8 = arith.constant 0 : index
    %13 = vector.load %arg5[%c0_7, %c0_8] : memref<1x128xf32, #tpu.memory_space<vmem>>, vector<1x128xf32>
    %14 = vector.broadcast %13 : vector<1x128xf32> to vector<64x128xf32>
    %15 = arith.addf %12, %14 : vector<64x128xf32>
    %16 = vector.shape_cast %15 : vector<64x128xf32> to vector<8x8x128xf32>
    %c0_9 = arith.constant 0 : index
    %c0_10 = arith.constant 0 : index
    %c0_11 = arith.constant 0 : index
    %17 = vector.load %arg9[%c0_9, %c0_10, %c0_11] : memref<8x8x128xf32, #tpu.memory_space<vmem>>, vector<8x8x128xf32>
    tpu.vector_store %arg9[%c0_9, %c0_10, %c0_11], %16 {strides = array<i32>} : memref<8x8x128xf32, #tpu.memory_space<vmem>>, vector<8x8x128xf32>,
    %c0_12 = arith.constant 0 : index
    %c0_13 = arith.constant 0 : index
    %18 = vector.load %arg4[%c0_12, %c0_13] : memref<128x128xf32, #tpu.memory_space<vmem>>, vector<128x128xf32>
    %cst_14 = arith.constant 0.000000e+00 : f32
    %19 = vector.broadcast %cst_14 : f32 to vector<8x128xf32>
    %c0_i32 = arith.constant 0 : i32
    %20 = arith.index_cast %c0_i32 : i32 to index
    %c0_15 = arith.constant 0 : index
    %c0_16 = arith.constant 0 : index
    %21 = vector.load %arg9[%20, %c0_15, %c0_16] : memref<8x8x128xf32, #tpu.memory_space<vmem>>, vector<1x8x128xf32>
    %22 = vector.shape_cast %21 : vector<1x8x128xf32> to vector<8x128xf32>
    %cst_17 = arith.constant dense<0.000000e+00> : vector<8x128xf32>
    %23 = tpu.matmul %19, %18, %cst_17 {dimension_numbers = #tpu.dot_dimension_numbers<[1], [0], [0], [1], [0, 0, 1, 1], [], []>} : vector<8x128xf32>, vector<128x128xf32>, vector<8x128xf32> -> vector<8x128xf32>
    %24 = arith.addf %22, %23 : vector<8x128xf32>
    %25 = math.tanh %24 : vector<8x128xf32>
    %c1_i32 = arith.constant 1 : i32
    %26 = arith.index_cast %c1_i32 : i32 to index
    %c0_18 = arith.constant 0 : index
    %c0_19 = arith.constant 0 : index
    %27 = vector.load %arg9[%26, %c0_18, %c0_19] : memref<8x8x128xf32, #tpu.memory_space<vmem>>, vector<1x8x128xf32>
    %28 = vector.shape_cast %27 : vector<1x8x128xf32> to vector<8x128xf32>
    %cst_20 = arith.constant dense<0.000000e+00> : vector<8x128xf32>
    %29 = tpu.matmul %25, %18, %cst_20 {dimension_numbers = #tpu.dot_dimension_numbers<[1], [0], [0], [1], [0, 0, 1, 1], [], []>} : vector<8x128xf32>, vector<128x128xf32>, vector<8x128xf32> -> vector<8x128xf32>
    %30 = arith.addf %28, %29 : vector<8x128xf32>
    %31 = math.tanh %30 : vector<8x128xf32>
    %c2_i32 = arith.constant 2 : i32
    %32 = arith.index_cast %c2_i32 : i32 to index
    %c0_21 = arith.constant 0 : index
    %c0_22 = arith.constant 0 : index
    %33 = vector.load %arg9[%32, %c0_21, %c0_22] : memref<8x8x128xf32, #tpu.memory_space<vmem>>, vector<1x8x128xf32>
    %34 = vector.shape_cast %33 : vector<1x8x128xf32> to vector<8x128xf32>
    %cst_23 = arith.constant dense<0.000000e+00> : vector<8x128xf32>
    %35 = tpu.matmul %31, %18, %cst_23 {dimension_numbers = #tpu.dot_dimension_numbers<[1], [0], [0], [1], [0, 0, 1, 1], [], []>} : vector<8x128xf32>, vector<128x128xf32>, vector<8x128xf32> -> vector<8x128xf32>
    %36 = arith.addf %34, %35 : vector<8x128xf32>
    %37 = math.tanh %36 : vector<8x128xf32>
    %c3_i32 = arith.constant 3 : i32
    %38 = arith.index_cast %c3_i32 : i32 to index
    %c0_24 = arith.constant 0 : index
    %c0_25 = arith.constant 0 : index
    %39 = vector.load %arg9[%38, %c0_24, %c0_25] : memref<8x8x128xf32, #tpu.memory_space<vmem>>, vector<1x8x128xf32>
    %40 = vector.shape_cast %39 : vector<1x8x128xf32> to vector<8x128xf32>
    %cst_26 = arith.constant dense<0.000000e+00> : vector<8x128xf32>
    %41 = tpu.matmul %37, %18, %cst_26 {dimension_numbers = #tpu.dot_dimension_numbers<[1], [0], [0], [1], [0, 0, 1, 1], [], []>} : vector<8x128xf32>, vector<128x128xf32>, vector<8x128xf32> -> vector<8x128xf32>
    %42 = arith.addf %40, %41 : vector<8x128xf32>
    %43 = math.tanh %42 : vector<8x128xf32>
    %c4_i32 = arith.constant 4 : i32
    %44 = arith.index_cast %c4_i32 : i32 to index
    %c0_27 = arith.constant 0 : index
    %c0_28 = arith.constant 0 : index
    %45 = vector.load %arg9[%44, %c0_27, %c0_28] : memref<8x8x128xf32, #tpu.memory_space<vmem>>, vector<1x8x128xf32>
    %46 = vector.shape_cast %45 : vector<1x8x128xf32> to vector<8x128xf32>
    %cst_29 = arith.constant dense<0.000000e+00> : vector<8x128xf32>
    %47 = tpu.matmul %43, %18, %cst_29 {dimension_numbers = #tpu.dot_dimension_numbers<[1], [0], [0], [1], [0, 0, 1, 1], [], []>} : vector<8x128xf32>, vector<128x128xf32>, vector<8x128xf32> -> vector<8x128xf32>
    %48 = arith.addf %46, %47 : vector<8x128xf32>
    %49 = math.tanh %48 : vector<8x128xf32>
    %c5_i32 = arith.constant 5 : i32
    %50 = arith.index_cast %c5_i32 : i32 to index
    %c0_30 = arith.constant 0 : index
    %c0_31 = arith.constant 0 : index
    %51 = vector.load %arg9[%50, %c0_30, %c0_31] : memref<8x8x128xf32, #tpu.memory_space<vmem>>, vector<1x8x128xf32>
    %52 = vector.shape_cast %51 : vector<1x8x128xf32> to vector<8x128xf32>
    %cst_32 = arith.constant dense<0.000000e+00> : vector<8x128xf32>
    %53 = tpu.matmul %49, %18, %cst_32 {dimension_numbers = #tpu.dot_dimension_numbers<[1], [0], [0], [1], [0, 0, 1, 1], [], []>} : vector<8x128xf32>, vector<128x128xf32>, vector<8x128xf32> -> vector<8x128xf32>
    %54 = arith.addf %52, %53 : vector<8x128xf32>
    %55 = math.tanh %54 : vector<8x128xf32>
    %c6_i32 = arith.constant 6 : i32
    %56 = arith.index_cast %c6_i32 : i32 to index
    %c0_33 = arith.constant 0 : index
    %c0_34 = arith.constant 0 : index
    %57 = vector.load %arg9[%56, %c0_33, %c0_34] : memref<8x8x128xf32, #tpu.memory_space<vmem>>, vector<1x8x128xf32>
    %58 = vector.shape_cast %57 : vector<1x8x128xf32> to vector<8x128xf32>
    %cst_35 = arith.constant dense<0.000000e+00> : vector<8x128xf32>
    %59 = tpu.matmul %55, %18, %cst_35 {dimension_numbers = #tpu.dot_dimension_numbers<[1], [0], [0], [1], [0, 0, 1, 1], [], []>} : vector<8x128xf32>, vector<128x128xf32>, vector<8x128xf32> -> vector<8x128xf32>
    %60 = arith.addf %58, %59 : vector<8x128xf32>
    %61 = math.tanh %60 : vector<8x128xf32>
    %c7_i32 = arith.constant 7 : i32
    %62 = arith.index_cast %c7_i32 : i32 to index
    %c0_36 = arith.constant 0 : index
    %c0_37 = arith.constant 0 : index
    %63 = vector.load %arg9[%62, %c0_36, %c0_37] : memref<8x8x128xf32, #tpu.memory_space<vmem>>, vector<1x8x128xf32>
    %64 = vector.shape_cast %63 : vector<1x8x128xf32> to vector<8x128xf32>
    %cst_38 = arith.constant dense<0.000000e+00> : vector<8x128xf32>
    %65 = tpu.matmul %61, %18, %cst_38 {dimension_numbers = #tpu.dot_dimension_numbers<[1], [0], [0], [1], [0, 0, 1, 1], [], []>} : vector<8x128xf32>, vector<128x128xf32>, vector<8x128xf32> -> vector<8x128xf32>
    %66 = arith.addf %64, %65 : vector<8x128xf32>
    %67 = math.tanh %66 : vector<8x128xf32>
    %c8_i32 = arith.constant 8 : i32
    %68 = arith.truncf %67 : vector<8x128xf32> to vector<8x128xbf16>
    %c0_39 = arith.constant 0 : index
    %c0_40 = arith.constant 0 : index
    %69 = vector.load %arg6[%c0_39, %c0_40] : memref<128x128xbf16, #tpu.memory_space<vmem>>, vector<128x128xbf16>
    %cst_41 = arith.constant dense<0.000000e+00> : vector<8x128xf32>
    %70 = tpu.matmul %68, %69, %cst_41 {dimension_numbers = #tpu.dot_dimension_numbers<[1], [0], [0], [1], [0, 0, 1, 1], [], []>} : vector<8x128xbf16>, vector<128x128xbf16>, vector<8x128xf32> -> vector<8x128xf32>
    %c0_42 = arith.constant 0 : index
    %c0_43 = arith.constant 0 : index
    %71 = vector.load %arg7[%c0_42, %c0_43] : memref<1x128xf32, #tpu.memory_space<vmem>>, vector<1x128xf32>
    %72 = vector.broadcast %71 : vector<1x128xf32> to vector<8x128xf32>
    %73 = arith.addf %70, %72 : vector<8x128xf32>
    %c0_44 = arith.constant 0 : index
    %c0_45 = arith.constant 0 : index
    %74 = vector.load %arg8[%c0_44, %c0_45] : memref<8x128xf32, #tpu.memory_space<vmem>>, vector<8x128xf32>
    tpu.vector_store %arg8[%c0_44, %c0_45], %73 {strides = array<i32>} : memref<8x128xf32, #tpu.memory_space<vmem>>, vector<8x128xf32>,
    return
  }
  func.func @transform_0(%arg0: i32) -> (i32, i32, i32) {
    %c0_i32 = arith.constant 0 : i32
    %c0_i32_0 = arith.constant 0 : i32
    %c0_i32_1 = arith.constant 0 : i32
    return %arg0, %c0_i32, %c0_i32_0 : i32, i32, i32
  }
  func.func @transform_1(%arg0: i32) -> (i32, i32) {
    %c0_i32 = arith.constant 0 : i32
    %c0_i32_0 = arith.constant 0 : i32
    %c0_i32_1 = arith.constant 0 : i32
    return %c0_i32, %c0_i32_0 : i32, i32
  }
  func.func @transform_2(%arg0: i32) -> (i32, i32) {
    %c0_i32 = arith.constant 0 : i32
    %c0_i32_0 = arith.constant 0 : i32
    %c0_i32_1 = arith.constant 0 : i32
    return %c0_i32, %c0_i32_0 : i32, i32
  }
  func.func @transform_3(%arg0: i32) -> (i32, i32) {
    %c0_i32 = arith.constant 0 : i32
    %c0_i32_0 = arith.constant 0 : i32
    %c0_i32_1 = arith.constant 0 : i32
    return %c0_i32, %c0_i32_0 : i32, i32
  }
  func.func @transform_4(%arg0: i32) -> (i32, i32) {
    %c0_i32 = arith.constant 0 : i32
    %c0_i32_0 = arith.constant 0 : i32
    %c0_i32_1 = arith.constant 0 : i32
    return %c0_i32, %c0_i32_0 : i32, i32
  }
  func.func @transform_5(%arg0: i32) -> (i32, i32) {
    %c0_i32 = arith.constant 0 : i32
    %c0_i32_0 = arith.constant 0 : i32
    %c0_i32_1 = arith.constant 0 : i32
    return %c0_i32, %c0_i32_0 : i32, i32
  }
  func.func @transform_6(%arg0: i32) -> (i32, i32) {
    %c0_i32 = arith.constant 0 : i32
    %c0_i32_0 = arith.constant 0 : i32
    %c0_i32_1 = arith.constant 0 : i32
    return %c0_i32, %c0_i32_0 : i32, i32
  }
  func.func @transform_7(%arg0: i32) -> (i32, i32) {
    %c0_i32 = arith.constant 0 : i32
    %c0_i32_0 = arith.constant 0 : i32
    return %arg0, %c0_i32 : i32, i32
  }
}

</mosaic_0001>

<llo_original>
// kernel: torch_model_forward.1
$region0: #{torch_model_forward.1}
  #allocation0 [shape = 'u32[]', space=smem, size = 0x4, offset = 0x4, fixed_abs, tag = 'smem constant byte address 0x4 - core index']
  #allocation1 [shape = 'u32[144,128]{1,0:T(1,128)}', space=vmem, size = 0x12000, scoped, tag = 'internal scratch']
  #allocation2 [shape = 'f32[8,8,128]{2,1,0:T(8,128)}', space=vmem, size = 0x8000, scoped, tag = 'scratch operand']
  %s0 = inlined_call_operand.vmem [shape: s32[1,64,1], index: 0, kind: input, shape index: {}]
  %s1 = inlined_call_operand.vmem [shape: bf16[16,128], index: 1, kind: input, shape index: {}]
  %s2 = inlined_call_operand.vmem [shape: bf16[128,128], index: 2, kind: input, shape index: {}]
  %s3 = inlined_call_operand.vmem [shape: f32[128,128], index: 3, kind: input, shape index: {}]
  %s4 = inlined_call_operand.vmem [shape: f32[1,128], index: 4, kind: input, shape index: {}]
  %s5 = inlined_call_operand.vmem [shape: bf16[128,128], index: 5, kind: input, shape index: {}]
  %s6 = inlined_call_operand.vmem [shape: f32[1,128], index: 6, kind: input, shape index: {}]
  %s7 = inlined_call_operand.vmem [shape: f32[8,128], index: 7, kind: output, shape index: {}]
  %s8 = sld [smem:[#allocation0]]
  $region38: #{torch_model_forward.1} parent=0
    _
  %s10 = ssub.s32 1, %s8
  %s11 = scalar_select 0, %s10, %s8
  // Predicated region
  $region2: #{torch_model_forward.1} parent=0 // pred_check
    _
  $region3: #{torch_model_forward.1} parent=0 // pred_check_branch
    %13 = sbr.rel (0) target = $region5
  $region4: #{torch_model_forward.1} parent=0 // pred_region
    _
  $region5: #{torch_model_forward.1} parent=0 // pred_fallthru
    _
  // Predicated region
  $region6: #{torch_model_forward.1} parent=0 // pred_check
    _
  $region7: #{torch_model_forward.1} parent=0 // pred_check_branch
    %15 = sbr.rel (0) target = $region9
  $region8: #{torch_model_forward.1} parent=0 // pred_region
    _
  $region9: #{torch_model_forward.1} parent=0 // pred_fallthru
    _
  // Predicated region
  $region10: #{torch_model_forward.1} parent=0 // pred_check
    _
  $region11: #{torch_model_forward.1} parent=0 // pred_check_branch
    %17 = sbr.rel (0) target = $region13
  $region12: #{torch_model_forward.1} parent=0 // pred_region
    _
  $region13: #{torch_model_forward.1} parent=0 // pred_fallthru
    _
  // Predicated region
  $region14: #{torch_model_forward.1} parent=0 // pred_check
    _
  $region15: #{torch_model_forward.1} parent=0 // pred_check_branch
    %19 = sbr.rel (0) target = $region17
  $region16: #{torch_model_forward.1} parent=0 // pred_region
    _
  $region17: #{torch_model_forward.1} parent=0 // pred_fallthru
    _
  // Predicated region
  $region18: #{torch_model_forward.1} parent=0 // pred_check
    _
  $region19: #{torch_model_forward.1} parent=0 // pred_check_branch
    %21 = sbr.rel (0) target = $region21
  $region20: #{torch_model_forward.1} parent=0 // pred_region
    _
  $region21: #{torch_model_forward.1} parent=0 // pred_fallthru
    _
  // Predicated region
  $region22: #{torch_model_forward.1} parent=0 // pred_check
    _
  $region23: #{torch_model_forward.1} parent=0 // pred_check_branch
    %23 = sbr.rel (0) target = $region25
  $region24: #{torch_model_forward.1} parent=0 // pred_region
    _
  $region25: #{torch_model_forward.1} parent=0 // pred_fallthru
    _
  // Predicated region
  $region26: #{torch_model_forward.1} parent=0 // pred_check
    _
  $region27: #{torch_model_forward.1} parent=0 // pred_check_branch
    %25 = sbr.rel (0) target = $region29
  $region28: #{torch_model_forward.1} parent=0 // pred_region
    _
  $region29: #{torch_model_forward.1} parent=0 // pred_fallthru
    _
  %v27 = vld [vmem:[%s0] sm:$0xff]
  %v28 = vld [vmem:[%s0 + $0x8] sm:$0xff]
  %v29 = vld [vmem:[%s0 + $0x10] sm:$0xff]
  %v30 = vld [vmem:[%s0 + $0x18] sm:$0xff]
  %v31 = vld [vmem:[%s0 + $0x20] sm:$0xff]
  %v32 = vld [vmem:[%s0 + $0x28] sm:$0xff]
  %v33 = vld [vmem:[%s0 + $0x30] sm:$0xff]
  %v34 = vld [vmem:[%s0 + $0x38] sm:$0xff]
  %v35 = vlaneseq
  %v36 = vand.u32 %v35, 127
  %37 = vset.pattern.permute.xlu0 0
  %38 = vperm.xlu0 %37, %v27
  %v39 = vpop.permute.xlu0 %38
  %40 = vset.pattern.permute.xlu0 0
  %41 = vperm.xlu0 %40, %v28
  %v42 = vpop.permute.xlu0 %41
  %43 = vset.pattern.permute.xlu0 0
  %44 = vperm.xlu0 %43, %v29
  %v45 = vpop.permute.xlu0 %44
  %46 = vset.pattern.permute.xlu0 0
  %47 = vperm.xlu0 %46, %v30
  %v48 = vpop.permute.xlu0 %47
  %49 = vset.pattern.permute.xlu0 0
  %50 = vperm.xlu0 %49, %v31
  %v51 = vpop.permute.xlu0 %50
  %52 = vset.pattern.permute.xlu0 0
  %53 = vperm.xlu0 %52, %v32
  %v54 = vpop.permute.xlu0 %53
  %55 = vset.pattern.permute.xlu0 0
  %56 = vperm.xlu0 %55, %v33
  %v57 = vpop.permute.xlu0 %56
  %58 = vset.pattern.permute.xlu0 0
  %59 = vperm.xlu0 %58, %v34
  %v60 = vpop.permute.xlu0 %59
  %vm61 = vcmp.eq.s32.totalorder %v36, %v39
  %vm62 = vcmp.eq.s32.totalorder %v36, %v42
  %vm63 = vcmp.eq.s32.totalorder %v36, %v45
  %vm64 = vcmp.eq.s32.totalorder %v36, %v48
  %vm65 = vcmp.eq.s32.totalorder %v36, %v51
  %vm66 = vcmp.eq.s32.totalorder %v36, %v54
  %vm67 = vcmp.eq.s32.totalorder %v36, %v57
  %vm68 = vcmp.eq.s32.totalorder %v36, %v60
  %v69 = vsel %vm61, 1, 0
  %v70 = vsel %vm62, 1, 0
  %v71 = vsel %vm63, 1, 0
  %v72 = vsel %vm64, 1, 0
  %v73 = vsel %vm65, 1, 0
  %v74 = vsel %vm66, 1, 0
  %v75 = vsel %vm67, 1, 0
  %v76 = vsel %vm68, 1, 0
  %v77 = vcvt.s32.f32 %v69
  %v78 = vcvt.s32.f32 %v70
  %v79 = vcvt.s32.f32 %v71
  %v80 = vcvt.s32.f32 %v72
  %v81 = vcvt.s32.f32 %v73
  %v82 = vcvt.s32.f32 %v74
  %v83 = vcvt.s32.f32 %v75
  %v84 = vcvt.s32.f32 %v76
  %v85 = vpack.c.bf16 %v78, %v77
  %v86 = vpack.c.bf16 %v80, %v79
  %v87 = vpack.c.bf16 %v82, %v81
  %v88 = vpack.c.bf16 %v84, %v83
  %v89 = vld [vmem:[%s1] sm:$0xf]
  %v90 = vld [vmem:[%s1 + $0x4] sm:$0xf]
  %v93 = vunpack.c.l.b16 %v89
  %v94 = vunpack.c.l.b16 %v90
  %v95 = vpack.c.b16 %v94, %v93
  %vm97 = vcmask 130048
  %v99 = vsel %vm97, %v85, 0
  %v102 = vsel %vm97, %v86, 0
  %v105 = vsel %vm97, %v87, 0
  %v108 = vsel %vm97, %v88, 0
  %110 = vmatprep.subr.bf16.mxu0 0
  %111 = vmatpush1.bf16.msra.mxu0 %v95
  %112 = vmatprep.subr.bf16.mxu0 0
  %113 = vmatpush1.bf16.msra.mxu0 0
  %114 = vmatprep.subr.bf16.mxu0 0
  %115 = vmatpush1.bf16.msra.mxu0 0
  %116 = vmatprep.subr.bf16.mxu0 0
  %117 = vmatpush1.bf16.msra.mxu0 0
  %118 = vmatprep.subr.bf16.mxu0 0
  %119 = vmatpush1.bf16.msra.mxu0 0
  %120 = vmatprep.subr.bf16.mxu0 0
  %121 = vmatpush1.bf16.msra.mxu0 0
  %122 = vmatprep.subr.bf16.mxu0 0
  %123 = vmatpush1.bf16.msra.mxu0 0
  %124 = vmatprep.subr.bf16.mxu0 0
  %125 = vmatpush1.bf16.msra.mxu0 0
  %126 = vmatprep.subr.bf16.mxu0 0
  %127 = vmatpush1.bf16.msra.mxu0 0
  %128 = vmatprep.subr.bf16.mxu0 0
  %129 = vmatpush1.bf16.msra.mxu0 0
  %130 = vmatprep.subr.bf16.mxu0 0
  %131 = vmatpush1.bf16.msra.mxu0 0
  %132 = vmatprep.subr.bf16.mxu0 0
  %133 = vmatpush1.bf16.msra.mxu0 0
  %134 = vmatprep.subr.bf16.mxu0 0
  %135 = vmatpush1.bf16.msra.mxu0 0
  %136 = vmatprep.subr.bf16.mxu0 0
  %137 = vmatpush1.bf16.msra.mxu0 0
  %138 = vmatprep.subr.bf16.mxu0 0
  %139 = vmatpush1.bf16.msra.mxu0 0
  %140 = vmatprep.subr.bf16.mxu0 0
  %141 = vmatpush1.bf16.msra.mxu0 0
  %142 = vmatprep.mubr.bf16.mxu0 0
  %143 = vmatmul.mubr.bf16.gmra.mrb[0].mxu0 %v99
  %v144 = vpop.f32.mrb[0].mxu0
  %v145 = vadd.f32 0.0, %v144
  %v146 = vpop.f32.mrb[0].mxu0
  %v147 = vpop.f32.mrb[0].mxu0
  %v148 = vadd.f32 0.0, %v147
  %v149 = vpop.f32.mrb[0].mxu0
  %150 = vmatprep.mubr.bf16.mxu0 0
  %151 = vmatmul.mubr.bf16.gmra.mrb[0].mxu0 %v102
  %v152 = vpop.f32.mrb[0].mxu0
  %v153 = vadd.f32 0.0, %v152
  %v154 = vpop.f32.mrb[0].mxu0
  %v155 = vpop.f32.mrb[0].mxu0
  %v156 = vadd.f32 0.0, %v155
  %v157 = vpop.f32.mrb[0].mxu0
  %158 = vmatprep.mubr.bf16.mxu0 0
  %159 = vmatmul.mubr.bf16.gmra.mrb[0].mxu0 %v105
  %v160 = vpop.f32.mrb[0].mxu0
  %v161 = vadd.f32 0.0, %v160
  %v162 = vpop.f32.mrb[0].mxu0
  %v163 = vpop.f32.mrb[0].mxu0
  %v164 = vadd.f32 0.0, %v163
  %v165 = vpop.f32.mrb[0].mxu0
  %166 = vmatprep.mubr.bf16.mxu0 0
  %167 = vmatmul.mubr.bf16.gmra.mrb[0].mxu0 %v108
  %v168 = vpop.f32.mrb[0].mxu0
  %v169 = vadd.f32 0.0, %v168
  %v170 = vpop.f32.mrb[0].mxu0
  %v171 = vpop.f32.mrb[0].mxu0
  %v172 = vadd.f32 0.0, %v171
  %v173 = vpop.f32.mrb[0].mxu0
  %174 = vdwg.mxu0
  %v175 = vpack.c.bf16 %v148, %v145
  %v176 = vpack.c.bf16 %v156, %v153
  %v177 = vpack.c.bf16 %v164, %v161
  %v178 = vpack.c.bf16 %v172, %v169
  %v179 = vld [vmem:[%s2] sm:$0xf]
  %v180 = vld [vmem:[%s2 + $0x4] sm:$0xf]
  %v181 = vld [vmem:[%s2 + $0x8] sm:$0xf]
  %v182 = vld [vmem:[%s2 + $0xc] sm:$0xf]
  %v183 = vld [vmem:[%s2 + $0x10] sm:$0xf]
  %v184 = vld [vmem:[%s2 + $0x14] sm:$0xf]
  %v185 = vld [vmem:[%s2 + $0x18] sm:$0xf]
  %v186 = vld [vmem:[%s2 + $0x1c] sm:$0xf]
  %v187 = vld [vmem:[%s2 + $0x20] sm:$0xf]
  %v188 = vld [vmem:[%s2 + $0x24] sm:$0xf]
  %v189 = vld [vmem:[%s2 + $0x28] sm:$0xf]
  %v190 = vld [vmem:[%s2 + $0x2c] sm:$0xf]
  %v191 = vld [vmem:[%s2 + $0x30] sm:$0xf]
  %v192 = vld [vmem:[%s2 + $0x34] sm:$0xf]
  %v193 = vld [vmem:[%s2 + $0x38] sm:$0xf]
  %v194 = vld [vmem:[%s2 + $0x3c] sm:$0xf]
  %v195 = vld [vmem:[%s4] sm:$0x1]
  %v197 = vlaneseq
  %v198 = vshrl.u32 %v197, 7
  %v199 = vsub.s32 0, %v198
  %v200 = vrot.slane %v195, %v199
  %v218 = vunpack.c.l.b16 %v179
  %v219 = vunpack.c.l.b16 %v180
  %v220 = vunpack.c.l.b16 %v181
  %v221 = vunpack.c.l.b16 %v182
  %v222 = vunpack.c.l.b16 %v183
  %v223 = vunpack.c.l.b16 %v184
  %v224 = vunpack.c.l.b16 %v185
  %v225 = vunpack.c.l.b16 %v186
  %v226 = vunpack.c.l.b16 %v187
  %v227 = vunpack.c.l.b16 %v188
  %v228 = vunpack.c.l.b16 %v189
  %v229 = vunpack.c.l.b16 %v190
  %v230 = vunpack.c.l.b16 %v191
  %v231 = vunpack.c.l.b16 %v192
  %v232 = vunpack.c.l.b16 %v193
  %v233 = vunpack.c.l.b16 %v194
  %v234 = vpack.c.b16 %v219, %v218
  %v235 = vpack.c.b16 %v221, %v220
  %v236 = vpack.c.b16 %v223, %v222
  %v237 = vpack.c.b16 %v225, %v224
  %v238 = vpack.c.b16 %v227, %v226
  %v239 = vpack.c.b16 %v229, %v228
  %v240 = vpack.c.b16 %v231, %v230
  %v241 = vpack.c.b16 %v233, %v232
  %250 = vmatprep.subr.bf16.mxu0 0
  %251 = vmatpush1.bf16.msra.mxu0 %v234
  %252 = vmatprep.subr.bf16.mxu0 0
  %253 = vmatpush1.bf16.msra.mxu0 %v235
  %254 = vmatprep.subr.bf16.mxu0 0
  %255 = vmatpush1.bf16.msra.mxu0 %v236
  %256 = vmatprep.subr.bf16.mxu0 0
  %257 = vmatpush1.bf16.msra.mxu0 %v237
  %258 = vmatprep.subr.bf16.mxu0 0
  %259 = vmatpush1.bf16.msra.mxu0 %v238
  %260 = vmatprep.subr.bf16.mxu0 0
  %261 = vmatpush1.bf16.msra.mxu0 %v239
  %262 = vmatprep.subr.bf16.mxu0 0
  %263 = vmatpush1.bf16.msra.mxu0 %v240
  %264 = vmatprep.subr.bf16.mxu0 0
  %265 = vmatpush1.bf16.msra.mxu0 %v241
  %266 = vmatprep.subr.bf16.mxu0 0
  %267 = vmatpush1.bf16.msra.mxu0 0
  %268 = vmatprep.subr.bf16.mxu0 0
  %269 = vmatpush1.bf16.msra.mxu0 0
  %270 = vmatprep.subr.bf16.mxu0 0
  %271 = vmatpush1.bf16.msra.mxu0 0
  %272 = vmatprep.subr.bf16.mxu0 0
  %273 = vmatpush1.bf16.msra.mxu0 0
  %274 = vmatprep.subr.bf16.mxu0 0
  %275 = vmatpush1.bf16.msra.mxu0 0
  %276 = vmatprep.subr.bf16.mxu0 0
  %277 = vmatpush1.bf16.msra.mxu0 0
  %278 = vmatprep.subr.bf16.mxu0 0
  %279 = vmatpush1.bf16.msra.mxu0 0
  %280 = vmatprep.subr.bf16.mxu0 0
  %281 = vmatpush1.bf16.msra.mxu0 0
  %282 = vmatprep.mubr.bf16.mxu0 0
  %283 = vmatmul.mubr.bf16.gmra.mrb[0].mxu0 %v175
  %v284 = vpop.f32.mrb[0].mxu0
  %v285 = vadd.f32 %v200, %v284
  %v286 = vpop.f32.mrb[0].mxu0
  %v287 = vpop.f32.mrb[0].mxu0
  %v288 = vadd.f32 %v200, %v287
  %v289 = vpop.f32.mrb[0].mxu0
  %290 = vmatprep.mubr.bf16.mxu0 0
  %291 = vmatmul.mubr.bf16.gmra.mrb[0].mxu0 %v176
  %v292 = vpop.f32.mrb[0].mxu0
  %v293 = vadd.f32 %v200, %v292
  %v294 = vpop.f32.mrb[0].mxu0
  %v295 = vpop.f32.mrb[0].mxu0
  %v296 = vadd.f32 %v200, %v295
  %v297 = vpop.f32.mrb[0].mxu0
  %298 = vmatprep.mubr.bf16.mxu0 0
  %299 = vmatmul.mubr.bf16.gmra.mrb[0].mxu0 %v177
  %v300 = vpop.f32.mrb[0].mxu0
  %v301 = vadd.f32 %v200, %v300
  %v302 = vpop.f32.mrb[0].mxu0
  %v303 = vpop.f32.mrb[0].mxu0
  %v304 = vadd.f32 %v200, %v303
  %v305 = vpop.f32.mrb[0].mxu0
  %306 = vmatprep.mubr.bf16.mxu0 0
  %307 = vmatmul.mubr.bf16.gmra.mrb[0].mxu0 %v178
  %v308 = vpop.f32.mrb[0].mxu0
  %v309 = vadd.f32 %v200, %v308
  %v310 = vpop.f32.mrb[0].mxu0
  %v311 = vpop.f32.mrb[0].mxu0
  %v312 = vadd.f32 %v200, %v311
  %v313 = vpop.f32.mrb[0].mxu0
  %314 = vdwg.mxu0
  %315 = vst [vmem:[#allocation2] sm:$0xff] %v285
  %316 = vst [vmem:[#allocation2 + $0x8] sm:$0xff] %v288
  %317 = vst [vmem:[#allocation2 + $0x10] sm:$0xff] %v293
  %318 = vst [vmem:[#allocation2 + $0x18] sm:$0xff] %v296
  %319 = vst [vmem:[#allocation2 + $0x20] sm:$0xff] %v301
  %320 = vst [vmem:[#allocation2 + $0x28] sm:$0xff] %v304
  %321 = vst [vmem:[#allocation2 + $0x30] sm:$0xff] %v309
  %322 = vst [vmem:[#allocation2 + $0x38] sm:$0xff] %v312
  %v323 = vld [vmem:[%s3] sm:$0xff]
  %v324 = vld [vmem:[%s3 + $0x8] sm:$0xff]
  %v325 = vld [vmem:[%s3 + $0x10] sm:$0xff]
  %v326 = vld [vmem:[%s3 + $0x18] sm:$0xff]
  %v327 = vld [vmem:[%s3 + $0x20] sm:$0xff]
  %v328 = vld [vmem:[%s3 + $0x28] sm:$0xff]
  %v329 = vld [vmem:[%s3 + $0x30] sm:$0xff]
  %v330 = vld [vmem:[%s3 + $0x38] sm:$0xff]
  %v331 = vld [vmem:[%s3 + $0x40] sm:$0xff]
  %v332 = vld [vmem:[%s3 + $0x48] sm:$0xff]
  %v333 = vld [vmem:[%s3 + $0x50] sm:$0xff]
  %v334 = vld [vmem:[%s3 + $0x58] sm:$0xff]
  %v335 = vld [vmem:[%s3 + $0x60] sm:$0xff]
  %v336 = vld [vmem:[%s3 + $0x68] sm:$0xff]
  %v337 = vld [vmem:[%s3 + $0x70] sm:$0xff]
  %v338 = vld [vmem:[%s3 + $0x78] sm:$0xff]
  %v339 = vld [vmem:[#allocation2] sm:$0xff]
  %340 = vmatprep.subr.mxu0 0.0
  %341 = vmatpush1.msra.mxu0 %v323
  %342 = vmatprep.subr.mxu0 0.0
  %343 = vmatpush1.msra.mxu0 %v324
  %344 = vmatprep.subr.mxu0 0.0
  %345 = vmatpush1.msra.mxu0 %v325
  %346 = vmatprep.subr.mxu0 0.0
  %347 = vmatpush1.msra.mxu0 %v326
  %348 = vmatprep.subr.mxu0 0.0
  %349 = vmatpush1.msra.mxu0 %v327
  %350 = vmatprep.subr.mxu0 0.0
  %351 = vmatpush1.msra.mxu0 %v328
  %352 = vmatprep.subr.mxu0 0.0
  %353 = vmatpush1.msra.mxu0 %v329
  %354 = vmatprep.subr.mxu0 0.0
  %355 = vmatpush1.msra.mxu0 %v330
  %356 = vmatprep.subr.mxu0 0.0
  %357 = vmatpush1.msra.mxu0 %v331
  %358 = vmatprep.subr.mxu0 0.0
  %359 = vmatpush1.msra.mxu0 %v332
  %360 = vmatprep.subr.mxu0 0.0
  %361 = vmatpush1.msra.mxu0 %v333
  %362 = vmatprep.subr.mxu0 0.0
  %363 = vmatpush1.msra.mxu0 %v334
  %364 = vmatprep.subr.mxu0 0.0
  %365 = vmatpush1.msra.mxu0 %v335
  %366 = vmatprep.subr.mxu0 0.0
  %367 = vmatpush1.msra.mxu0 %v336
  %368 = vmatprep.subr.mxu0 0.0
  %369 = vmatpush1.msra.mxu0 %v337
  %370 = vmatprep.subr.mxu0 0.0
  %371 = vmatpush1.msra.mxu0 %v338
  %372 = vmatprep.subr.mxu0 0.0
  %373 = vmatpush1.msra.mxu0 0.0
  %374 = vmatprep.subr.mxu0 0.0
  %375 = vmatpush1.msra.mxu0 0.0
  %376 = vmatprep.subr.mxu0 0.0
  %377 = vmatpush1.msra.mxu0 0.0
  %378 = vmatprep.subr.mxu0 0.0
  %379 = vmatpush1.msra.mxu0 0.0
  %380 = vmatprep.subr.mxu0 0.0
  %381 = vmatpush1.msra.mxu0 0.0
  %382 = vmatprep.subr.mxu0 0.0
  %383 = vmatpush1.msra.mxu0 0.0
  %384 = vmatprep.subr.mxu0 0.0
  %385 = vmatpush1.msra.mxu0 0.0
  %386 = vmatprep.subr.mxu0 0.0
  %387 = vmatpush1.msra.mxu0 0.0
  %388 = vmatprep.subr.mxu0 0.0
  %389 = vmatpush1.msra.mxu0 0.0
  %390 = vmatprep.subr.mxu0 0.0
  %391 = vmatpush1.msra.mxu0 0.0
  %392 = vmatprep.subr.mxu0 0.0
  %393 = vmatpush1.msra.mxu0 0.0
  %394 = vmatprep.subr.mxu0 0.0
  %395 = vmatpush1.msra.mxu0 0.0
  %396 = vmatprep.subr.mxu0 0.0
  %397 = vmatpush1.msra.mxu0 0.0
  %398 = vmatprep.subr.mxu0 0.0
  %399 = vmatpush1.msra.mxu0 0.0
  %400 = vmatprep.subr.mxu0 0.0
  %401 = vmatpush1.msra.mxu0 0.0
  %402 = vmatprep.subr.mxu0 0.0
  %403 = vmatpush1.msra.mxu0 0.0
  %404 = vmatprep.mubr.f32.mxu0 0.0
  %405 = vmatmul.mubr.f32.gmra.mrb[0].mxu0 0.0
  %v406 = vpop.f32.mrb[0].mxu0
  %v407 = vadd.f32 0.0, %v406
  %v408 = vpop.f32.mrb[0].mxu0
  %409 = vdwg.mxu0
  %v410 = vadd.f32 %v339, %v407
  %v411 = vtanh.pop %v410
  %s412 = scalar_lea.vmem [#allocation2], 8
  %v413 = vld [vmem:[%s412] sm:$0xff]
  %414 = vmatprep.subr.mxu0 0.0
  %415 = vmatpush1.msra.mxu0 %v323
  %416 = vmatprep.subr.mxu0 0.0
  %417 = vmatpush1.msra.mxu0 %v324
  %418 = vmatprep.subr.mxu0 0.0
  %419 = vmatpush1.msra.mxu0 %v325
  %420 = vmatprep.subr.mxu0 0.0
  %421 = vmatpush1.msra.mxu0 %v326
  %422 = vmatprep.subr.mxu0 0.0
  %423 = vmatpush1.msra.mxu0 %v327
  %424 = vmatprep.subr.mxu0 0.0
  %425 = vmatpush1.msra.mxu0 %v328
  %426 = vmatprep.subr.mxu0 0.0
  %427 = vmatpush1.msra.mxu0 %v329
  %428 = vmatprep.subr.mxu0 0.0
  %429 = vmatpush1.msra.mxu0 %v330
  %430 = vmatprep.subr.mxu0 0.0
  %431 = vmatpush1.msra.mxu0 %v331
  %432 = vmatprep.subr.mxu0 0.0
  %433 = vmatpush1.msra.mxu0 %v332
  %434 = vmatprep.subr.mxu0 0.0
  %435 = vmatpush1.msra.mxu0 %v333
  %436 = vmatprep.subr.mxu0 0.0
  %437 = vmatpush1.msra.mxu0 %v334
  %438 = vmatprep.subr.mxu0 0.0
  %439 = vmatpush1.msra.mxu0 %v335
  %440 = vmatprep.subr.mxu0 0.0
  %441 = vmatpush1.msra.mxu0 %v336
  %442 = vmatprep.subr.mxu0 0.0
  %443 = vmatpush1.msra.mxu0 %v337
  %444 = vmatprep.subr.mxu0 0.0
  %445 = vmatpush1.msra.mxu0 %v338
  %446 = vmatprep.subr.mxu0 0.0
  %447 = vmatpush1.msra.mxu0 0.0
  %448 = vmatprep.subr.mxu0 0.0
  %449 = vmatpush1.msra.mxu0 0.0
  %450 = vmatprep.subr.mxu0 0.0
  %451 = vmatpush1.msra.mxu0 0.0
  %452 = vmatprep.subr.mxu0 0.0
  %453 = vmatpush1.msra.mxu0 0.0
  %454 = vmatprep.subr.mxu0 0.0
  %455 = vmatpush1.msra.mxu0 0.0
  %456 = vmatprep.subr.mxu0 0.0
  %457 = vmatpush1.msra.mxu0 0.0
  %458 = vmatprep.subr.mxu0 0.0
  %459 = vmatpush1.msra.mxu0 0.0
  %460 = vmatprep.subr.mxu0 0.0
  %461 = vmatpush1.msra.mxu0 0.0
  %462 = vmatprep.subr.mxu0 0.0
  %463 = vmatpush1.msra.mxu0 0.0
  %464 = vmatprep.subr.mxu0 0.0
  %465 = vmatpush1.msra.mxu0 0.0
  %466 = vmatprep.subr.mxu0 0.0
  %467 = vmatpush1.msra.mxu0 0.0
  %468 = vmatprep.subr.mxu0 0.0
  %469 = vmatpush1.msra.mxu0 0.0
  %470 = vmatprep.subr.mxu0 0.0
  %471 = vmatpush1.msra.mxu0 0.0
  %472 = vmatprep.subr.mxu0 0.0
  %473 = vmatpush1.msra.mxu0 0.0
  %474 = vmatprep.subr.mxu0 0.0
  %475 = vmatpush1.msra.mxu0 0.0
  %476 = vmatprep.subr.mxu0 0.0
  %477 = vmatpush1.msra.mxu0 0.0
  %478 = vmatprep.mubr.f32.mxu0 0.0
  %479 = vmatmul.mubr.f32.gmra.mrb[0].mxu0 %v411
  %v480 = vpop.f32.mrb[0].mxu0
  %v481 = vadd.f32 0.0, %v480
  %v482 = vpop.f32.mrb[0].mxu0
  %483 = vdwg.mxu0
  %v484 = vadd.f32 %v413, %v481
  %v485 = vtanh.pop %v484
  %s486 = scalar_lea.vmem [#allocation2], 16
  %v487 = vld [vmem:[%s486] sm:$0xff]
  %488 = vmatprep.subr.mxu0 0.0
  %489 = vmatpush1.msra.mxu0 %v323
  %490 = vmatprep.subr.mxu0 0.0
  %491 = vmatpush1.msra.mxu0 %v324
  %492 = vmatprep.subr.mxu0 0.0
  %493 = vmatpush1.msra.mxu0 %v325
  %494 = vmatprep.subr.mxu0 0.0
  %495 = vmatpush1.msra.mxu0 %v326
  %496 = vmatprep.subr.mxu0 0.0
  %497 = vmatpush1.msra.mxu0 %v327
  %498 = vmatprep.subr.mxu0 0.0
  %499 = vmatpush1.msra.mxu0 %v328
  %500 = vmatprep.subr.mxu0 0.0
  %501 = vmatpush1.msra.mxu0 %v329
  %502 = vmatprep.subr.mxu0 0.0
  %503 = vmatpush1.msra.mxu0 %v330
  %504 = vmatprep.subr.mxu0 0.0
  %505 = vmatpush1.msra.mxu0 %v331
  %506 = vmatprep.subr.mxu0 0.0
  %507 = vmatpush1.msra.mxu0 %v332
  %508 = vmatprep.subr.mxu0 0.0
  %509 = vmatpush1.msra.mxu0 %v333
  %510 = vmatprep.subr.mxu0 0.0
  %511 = vmatpush1.msra.mxu0 %v334
  %512 = vmatprep.subr.mxu0 0.0
  %513 = vmatpush1.msra.mxu0 %v335
  %514 = vmatprep.subr.mxu0 0.0
  %515 = vmatpush1.msra.mxu0 %v336
  %516 = vmatprep.subr.mxu0 0.0
  %517 = vmatpush1.msra.mxu0 %v337
  %518 = vmatprep.subr.mxu0 0.0
  %519 = vmatpush1.msra.mxu0 %v338
  %520 = vmatprep.subr.mxu0 0.0
  %521 = vmatpush1.msra.mxu0 0.0
  %522 = vmatprep.subr.mxu0 0.0
  %523 = vmatpush1.msra.mxu0 0.0
  %524 = vmatprep.subr.mxu0 0.0
  %525 = vmatpush1.msra.mxu0 0.0
  %526 = vmatprep.subr.mxu0 0.0
  %527 = vmatpush1.msra.mxu0 0.0
  %528 = vmatprep.subr.mxu0 0.0
  %529 = vmatpush1.msra.mxu0 0.0
  %530 = vmatprep.subr.mxu0 0.0
  %531 = vmatpush1.msra.mxu0 0.0
  %532 = vmatprep.subr.mxu0 0.0
  %533 = vmatpush1.msra.mxu0 0.0
  %534 = vmatprep.subr.mxu0 0.0
  %535 = vmatpush1.msra.mxu0 0.0
  %536 = vmatprep.subr.mxu0 0.0
  %537 = vmatpush1.msra.mxu0 0.0
  %538 = vmatprep.subr.mxu0 0.0
  %539 = vmatpush1.msra.mxu0 0.0
  %540 = vmatprep.subr.mxu0 0.0
  %541 = vmatpush1.msra.mxu0 0.0
  %542 = vmatprep.subr.mxu0 0.0
  %543 = vmatpush1.msra.mxu0 0.0
  %544 = vmatprep.subr.mxu0 0.0
  %545 = vmatpush1.msra.mxu0 0.0
  %546 = vmatprep.subr.mxu0 0.0
  %547 = vmatpush1.msra.mxu0 0.0
  %548 = vmatprep.subr.mxu0 0.0
  %549 = vmatpush1.msra.mxu0 0.0
  %550 = vmatprep.subr.mxu0 0.0
  %551 = vmatpush1.msra.mxu0 0.0
  %552 = vmatprep.mubr.f32.mxu0 0.0
  %553 = vmatmul.mubr.f32.gmra.mrb[0].mxu0 %v485
  %v554 = vpop.f32.mrb[0].mxu0
  %v555 = vadd.f32 0.0, %v554
  %v556 = vpop.f32.mrb[0].mxu0
  %557 = vdwg.mxu0
  %v558 = vadd.f32 %v487, %v555
  %v559 = vtanh.pop %v558
  %s560 = scalar_lea.vmem [#allocation2], 24
  %v561 = vld [vmem:[%s560] sm:$0xff]
  %562 = vmatprep.subr.mxu0 0.0
  %563 = vmatpush1.msra.mxu0 %v323
  %564 = vmatprep.subr.mxu0 0.0
  %565 = vmatpush1.msra.mxu0 %v324
  %566 = vmatprep.subr.mxu0 0.0
  %567 = vmatpush1.msra.mxu0 %v325
  %568 = vmatprep.subr.mxu0 0.0
  %569 = vmatpush1.msra.mxu0 %v326
  %570 = vmatprep.subr.mxu0 0.0
  %571 = vmatpush1.msra.mxu0 %v327
  %572 = vmatprep.subr.mxu0 0.0
  %573 = vmatpush1.msra.mxu0 %v328
  %574 = vmatprep.subr.mxu0 0.0
  %575 = vmatpush1.msra.mxu0 %v329
  %576 = vmatprep.subr.mxu0 0.0
  %577 = vmatpush1.msra.mxu0 %v330
  %578 = vmatprep.subr.mxu0 0.0
  %579 = vmatpush1.msra.mxu0 %v331
  %580 = vmatprep.subr.mxu0 0.0
  %581 = vmatpush1.msra.mxu0 %v332
  %582 = vmatprep.subr.mxu0 0.0
  %583 = vmatpush1.msra.mxu0 %v333
  %584 = vmatprep.subr.mxu0 0.0
  %585 = vmatpush1.msra.mxu0 %v334
  %586 = vmatprep.subr.mxu0 0.0
  %587 = vmatpush1.msra.mxu0 %v335
  %588 = vmatprep.subr.mxu0 0.0
  %589 = vmatpush1.msra.mxu0 %v336
  %590 = vmatprep.subr.mxu0 0.0
  %591 = vmatpush1.msra.mxu0 %v337
  %592 = vmatprep.subr.mxu0 0.0
  %593 = vmatpush1.msra.mxu0 %v338
  %594 = vmatprep.subr.mxu0 0.0
  %595 = vmatpush1.msra.mxu0 0.0
  %596 = vmatprep.subr.mxu0 0.0
  %597 = vmatpush1.msra.mxu0 0.0
  %598 = vmatprep.subr.mxu0 0.0
  %599 = vmatpush1.msra.mxu0 0.0
  %600 = vmatprep.subr.mxu0 0.0
  %601 = vmatpush1.msra.mxu0 0.0
  %602 = vmatprep.subr.mxu0 0.0
  %603 = vmatpush1.msra.mxu0 0.0
  %604 = vmatprep.subr.mxu0 0.0
  %605 = vmatpush1.msra.mxu0 0.0
  %606 = vmatprep.subr.mxu0 0.0
  %607 = vmatpush1.msra.mxu0 0.0
  %608 = vmatprep.subr.mxu0 0.0
  %609 = vmatpush1.msra.mxu0 0.0
  %610 = vmatprep.subr.mxu0 0.0
  %611 = vmatpush1.msra.mxu0 0.0
  %612 = vmatprep.subr.mxu0 0.0
  %613 = vmatpush1.msra.mxu0 0.0
  %614 = vmatprep.subr.mxu0 0.0
  %615 = vmatpush1.msra.mxu0 0.0
  %616 = vmatprep.subr.mxu0 0.0
  %617 = vmatpush1.msra.mxu0 0.0
  %618 = vmatprep.subr.mxu0 0.0
  %619 = vmatpush1.msra.mxu0 0.0
  %620 = vmatprep.subr.mxu0 0.0
  %621 = vmatpush1.msra.mxu0 0.0
  %622 = vmatprep.subr.mxu0 0.0
  %623 = vmatpush1.msra.mxu0 0.0
  %624 = vmatprep.subr.mxu0 0.0
  %625 = vmatpush1.msra.mxu0 0.0
  %626 = vmatprep.mubr.f32.mxu0 0.0
  %627 = vmatmul.mubr.f32.gmra.mrb[0].mxu0 %v559
  %v628 = vpop.f32.mrb[0].mxu0
  %v629 = vadd.f32 0.0, %v628
  %v630 = vpop.f32.mrb[0].mxu0
  %631 = vdwg.mxu0
  %v632 = vadd.f32 %v561, %v629
  %v633 = vtanh.pop %v632
  %s634 = scalar_lea.vmem [#allocation2], 32
  %v635 = vld [vmem:[%s634] sm:$0xff]
  %636 = vmatprep.subr.mxu0 0.0
  %637 = vmatpush1.msra.mxu0 %v323
  %638 = vmatprep.subr.mxu0 0.0
  %639 = vmatpush1.msra.mxu0 %v324
  %640 = vmatprep.subr.mxu0 0.0
  %641 = vmatpush1.msra.mxu0 %v325
  %642 = vmatprep.subr.mxu0 0.0
  %643 = vmatpush1.msra.mxu0 %v326
  %644 = vmatprep.subr.mxu0 0.0
  %645 = vmatpush1.msra.mxu0 %v327
  %646 = vmatprep.subr.mxu0 0.0
  %647 = vmatpush1.msra.mxu0 %v328
  %648 = vmatprep.subr.mxu0 0.0
  %649 = vmatpush1.msra.mxu0 %v329
  %650 = vmatprep.subr.mxu0 0.0
  %651 = vmatpush1.msra.mxu0 %v330
  %652 = vmatprep.subr.mxu0 0.0
  %653 = vmatpush1.msra.mxu0 %v331
  %654 = vmatprep.subr.mxu0 0.0
  %655 = vmatpush1.msra.mxu0 %v332
  %656 = vmatprep.subr.mxu0 0.0
  %657 = vmatpush1.msra.mxu0 %v333
  %658 = vmatprep.subr.mxu0 0.0
  %659 = vmatpush1.msra.mxu0 %v334
  %660 = vmatprep.subr.mxu0 0.0
  %661 = vmatpush1.msra.mxu0 %v335
  %662 = vmatprep.subr.mxu0 0.0
  %663 = vmatpush1.msra.mxu0 %v336
  %664 = vmatprep.subr.mxu0 0.0
  %665 = vmatpush1.msra.mxu0 %v337
  %666 = vmatprep.subr.mxu0 0.0
  %667 = vmatpush1.msra.mxu0 %v338
  %668 = vmatprep.subr.mxu0 0.0
  %669 = vmatpush1.msra.mxu0 0.0
  %670 = vmatprep.subr.mxu0 0.0
  %671 = vmatpush1.msra.mxu0 0.0
  %672 = vmatprep.subr.mxu0 0.0
  %673 = vmatpush1.msra.mxu0 0.0
  %674 = vmatprep.subr.mxu0 0.0
  %675 = vmatpush1.msra.mxu0 0.0
  %676 = vmatprep.subr.mxu0 0.0
  %677 = vmatpush1.msra.mxu0 0.0
  %678 = vmatprep.subr.mxu0 0.0
  %679 = vmatpush1.msra.mxu0 0.0
  %680 = vmatprep.subr.mxu0 0.0
  %681 = vmatpush1.msra.mxu0 0.0
  %682 = vmatprep.subr.mxu0 0.0
  %683 = vmatpush1.msra.mxu0 0.0
  %684 = vmatprep.subr.mxu0 0.0
  %685 = vmatpush1.msra.mxu0 0.0
  %686 = vmatprep.subr.mxu0 0.0
  %687 = vmatpush1.msra.mxu0 0.0
  %688 = vmatprep.subr.mxu0 0.0
  %689 = vmatpush1.msra.mxu0 0.0
  %690 = vmatprep.subr.mxu0 0.0
  %691 = vmatpush1.msra.mxu0 0.0
  %692 = vmatprep.subr.mxu0 0.0
  %693 = vmatpush1.msra.mxu0 0.0
  %694 = vmatprep.subr.mxu0 0.0
  %695 = vmatpush1.msra.mxu0 0.0
  %696 = vmatprep.subr.mxu0 0.0
  %697 = vmatpush1.msra.mxu0 0.0
  %698 = vmatprep.subr.mxu0 0.0
  %699 = vmatpush1.msra.mxu0 0.0
  %700 = vmatprep.mubr.f32.mxu0 0.0
  %701 = vmatmul.mubr.f32.gmra.mrb[0].mxu0 %v633
  %v702 = vpop.f32.mrb[0].mxu0
  %v703 = vadd.f32 0.0, %v702
  %v704 = vpop.f32.mrb[0].mxu0
  %705 = vdwg.mxu0
  %v706 = vadd.f32 %v635, %v703
  %v707 = vtanh.pop %v706
  %s708 = scalar_lea.vmem [#allocation2], 40
  %v709 = vld [vmem:[%s708] sm:$0xff]
  %710 = vmatprep.subr.mxu0 0.0
  %711 = vmatpush1.msra.mxu0 %v323
  %712 = vmatprep.subr.mxu0 0.0
  %713 = vmatpush1.msra.mxu0 %v324
  %714 = vmatprep.subr.mxu0 0.0
  %715 = vmatpush1.msra.mxu0 %v325
  %716 = vmatprep.subr.mxu0 0.0
  %717 = vmatpush1.msra.mxu0 %v326
  %718 = vmatprep.subr.mxu0 0.0
  %719 = vmatpush1.msra.mxu0 %v327
  %720 = vmatprep.subr.mxu0 0.0
  %721 = vmatpush1.msra.mxu0 %v328
  %722 = vmatprep.subr.mxu0 0.0
  %723 = vmatpush1.msra.mxu0 %v329
  %724 = vmatprep.subr.mxu0 0.0
  %725 = vmatpush1.msra.mxu0 %v330
  %726 = vmatprep.subr.mxu0 0.0
  %727 = vmatpush1.msra.mxu0 %v331
  %728 = vmatprep.subr.mxu0 0.0
  %729 = vmatpush1.msra.mxu0 %v332
  %730 = vmatprep.subr.mxu0 0.0
  %731 = vmatpush1.msra.mxu0 %v333
  %732 = vmatprep.subr.mxu0 0.0
  %733 = vmatpush1.msra.mxu0 %v334
  %734 = vmatprep.subr.mxu0 0.0
  %735 = vmatpush1.msra.mxu0 %v335
  %736 = vmatprep.subr.mxu0 0.0
  %737 = vmatpush1.msra.mxu0 %v336
  %738 = vmatprep.subr.mxu0 0.0
  %739 = vmatpush1.msra.mxu0 %v337
  %740 = vmatprep.subr.mxu0 0.0
  %741 = vmatpush1.msra.mxu0 %v338
  %742 = vmatprep.subr.mxu0 0.0
  %743 = vmatpush1.msra.mxu0 0.0
  %744 = vmatprep.subr.mxu0 0.0
  %745 = vmatpush1.msra.mxu0 0.0
  %746 = vmatprep.subr.mxu0 0.0
  %747 = vmatpush1.msra.mxu0 0.0
  %748 = vmatprep.subr.mxu0 0.0
  %749 = vmatpush1.msra.mxu0 0.0
  %750 = vmatprep.subr.mxu0 0.0
  %751 = vmatpush1.msra.mxu0 0.0
  %752 = vmatprep.subr.mxu0 0.0
  %753 = vmatpush1.msra.mxu0 0.0
  %754 = vmatprep.subr.mxu0 0.0
  %755 = vmatpush1.msra.mxu0 0.0
  %756 = vmatprep.subr.mxu0 0.0
  %757 = vmatpush1.msra.mxu0 0.0
  %758 = vmatprep.subr.mxu0 0.0
  %759 = vmatpush1.msra.mxu0 0.0
  %760 = vmatprep.subr.mxu0 0.0
  %761 = vmatpush1.msra.mxu0 0.0
  %762 = vmatprep.subr.mxu0 0.0
  %763 = vmatpush1.msra.mxu0 0.0
  %764 = vmatprep.subr.mxu0 0.0
  %765 = vmatpush1.msra.mxu0 0.0
  %766 = vmatprep.subr.mxu0 0.0
  %767 = vmatpush1.msra.mxu0 0.0
  %768 = vmatprep.subr.mxu0 0.0
  %769 = vmatpush1.msra.mxu0 0.0
  %770 = vmatprep.subr.mxu0 0.0
  %771 = vmatpush1.msra.mxu0 0.0
  %772 = vmatprep.subr.mxu0 0.0
  %773 = vmatpush1.msra.mxu0 0.0
  %774 = vmatprep.mubr.f32.mxu0 0.0
  %775 = vmatmul.mubr.f32.gmra.mrb[0].mxu0 %v707
  %v776 = vpop.f32.mrb[0].mxu0
  %v777 = vadd.f32 0.0, %v776
  %v778 = vpop.f32.mrb[0].mxu0
  %779 = vdwg.mxu0
  %v780 = vadd.f32 %v709, %v777
  %v781 = vtanh.pop %v780
  %s782 = scalar_lea.vmem [#allocation2], 48
  %v783 = vld [vmem:[%s782] sm:$0xff]
  %784 = vmatprep.subr.mxu0 0.0
  %785 = vmatpush1.msra.mxu0 %v323
  %786 = vmatprep.subr.mxu0 0.0
  %787 = vmatpush1.msra.mxu0 %v324
  %788 = vmatprep.subr.mxu0 0.0
  %789 = vmatpush1.msra.mxu0 %v325
  %790 = vmatprep.subr.mxu0 0.0
  %791 = vmatpush1.msra.mxu0 %v326
  %792 = vmatprep.subr.mxu0 0.0
  %793 = vmatpush1.msra.mxu0 %v327
  %794 = vmatprep.subr.mxu0 0.0
  %795 = vmatpush1.msra.mxu0 %v328
  %796 = vmatprep.subr.mxu0 0.0
  %797 = vmatpush1.msra.mxu0 %v329
  %798 = vmatprep.subr.mxu0 0.0
  %799 = vmatpush1.msra.mxu0 %v330
  %800 = vmatprep.subr.mxu0 0.0
  %801 = vmatpush1.msra.mxu0 %v331
  %802 = vmatprep.subr.mxu0 0.0
  %803 = vmatpush1.msra.mxu0 %v332
  %804 = vmatprep.subr.mxu0 0.0
  %805 = vmatpush1.msra.mxu0 %v333
  %806 = vmatprep.subr.mxu0 0.0
  %807 = vmatpush1.msra.mxu0 %v334
  %808 = vmatprep.subr.mxu0 0.0
  %809 = vmatpush1.msra.mxu0 %v335
  %810 = vmatprep.subr.mxu0 0.0
  %811 = vmatpush1.msra.mxu0 %v336
  %812 = vmatprep.subr.mxu0 0.0
  %813 = vmatpush1.msra.mxu0 %v337
  %814 = vmatprep.subr.mxu0 0.0
  %815 = vmatpush1.msra.mxu0 %v338
  %816 = vmatprep.subr.mxu0 0.0
  %817 = vmatpush1.msra.mxu0 0.0
  %818 = vmatprep.subr.mxu0 0.0
  %819 = vmatpush1.msra.mxu0 0.0
  %820 = vmatprep.subr.mxu0 0.0
  %821 = vmatpush1.msra.mxu0 0.0
  %822 = vmatprep.subr.mxu0 0.0
  %823 = vmatpush1.msra.mxu0 0.0
  %824 = vmatprep.subr.mxu0 0.0
  %825 = vmatpush1.msra.mxu0 0.0
  %826 = vmatprep.subr.mxu0 0.0
  %827 = vmatpush1.msra.mxu0 0.0
  %828 = vmatprep.subr.mxu0 0.0
  %829 = vmatpush1.msra.mxu0 0.0
  %830 = vmatprep.subr.mxu0 0.0
  %831 = vmatpush1.msra.mxu0 0.0
  %832 = vmatprep.subr.mxu0 0.0
  %833 = vmatpush1.msra.mxu0 0.0
  %834 = vmatprep.subr.mxu0 0.0
  %835 = vmatpush1.msra.mxu0 0.0
  %836 = vmatprep.subr.mxu0 0.0
  %837 = vmatpush1.msra.mxu0 0.0
  %838 = vmatprep.subr.mxu0 0.0
  %839 = vmatpush1.msra.mxu0 0.0
  %840 = vmatprep.subr.mxu0 0.0
  %841 = vmatpush1.msra.mxu0 0.0
  %842 = vmatprep.subr.mxu0 0.0
  %843 = vmatpush1.msra.mxu0 0.0
  %844 = vmatprep.subr.mxu0 0.0
  %845 = vmatpush1.msra.mxu0 0.0
  %846 = vmatprep.subr.mxu0 0.0
  %847 = vmatpush1.msra.mxu0 0.0
  %848 = vmatprep.mubr.f32.mxu0 0.0
  %849 = vmatmul.mubr.f32.gmra.mrb[0].mxu0 %v781
  %v850 = vpop.f32.mrb[0].mxu0
  %v851 = vadd.f32 0.0, %v850
  %v852 = vpop.f32.mrb[0].mxu0
  %853 = vdwg.mxu0
  %v854 = vadd.f32 %v783, %v851
  %v855 = vtanh.pop %v854
  %s856 = scalar_lea.vmem [#allocation2], 56
  %v857 = vld [vmem:[%s856] sm:$0xff]
  %858 = vmatprep.subr.mxu0 0.0
  %859 = vmatpush1.msra.mxu0 %v323
  %860 = vmatprep.subr.mxu0 0.0
  %861 = vmatpush1.msra.mxu0 %v324
  %862 = vmatprep.subr.mxu0 0.0
  %863 = vmatpush1.msra.mxu0 %v325
  %864 = vmatprep.subr.mxu0 0.0
  %865 = vmatpush1.msra.mxu0 %v326
  %866 = vmatprep.subr.mxu0 0.0
  %867 = vmatpush1.msra.mxu0 %v327
  %868 = vmatprep.subr.mxu0 0.0
  %869 = vmatpush1.msra.mxu0 %v328
  %870 = vmatprep.subr.mxu0 0.0
  %871 = vmatpush1.msra.mxu0 %v329
  %872 = vmatprep.subr.mxu0 0.0
  %873 = vmatpush1.msra.mxu0 %v330
  %874 = vmatprep.subr.mxu0 0.0
  %875 = vmatpush1.msra.mxu0 %v331
  %876 = vmatprep.subr.mxu0 0.0
  %877 = vmatpush1.msra.mxu0 %v332
  %878 = vmatprep.subr.mxu0 0.0
  %879 = vmatpush1.msra.mxu0 %v333
  %880 = vmatprep.subr.mxu0 0.0
  %881 = vmatpush1.msra.mxu0 %v334
  %882 = vmatprep.subr.mxu0 0.0
  %883 = vmatpush1.msra.mxu0 %v335
  %884 = vmatprep.subr.mxu0 0.0
  %885 = vmatpush1.msra.mxu0 %v336
  %886 = vmatprep.subr.mxu0 0.0
  %887 = vmatpush1.msra.mxu0 %v337
  %888 = vmatprep.subr.mxu0 0.0
  %889 = vmatpush1.msra.mxu0 %v338
  %890 = vmatprep.subr.mxu0 0.0
  %891 = vmatpush1.msra.mxu0 0.0
  %892 = vmatprep.subr.mxu0 0.0
  %893 = vmatpush1.msra.mxu0 0.0
  %894 = vmatprep.subr.mxu0 0.0
  %895 = vmatpush1.msra.mxu0 0.0
  %896 = vmatprep.subr.mxu0 0.0
  %897 = vmatpush1.msra.mxu0 0.0
  %898 = vmatprep.subr.mxu0 0.0
  %899 = vmatpush1.msra.mxu0 0.0
  %900 = vmatprep.subr.mxu0 0.0
  %901 = vmatpush1.msra.mxu0 0.0
  %902 = vmatprep.subr.mxu0 0.0
  %903 = vmatpush1.msra.mxu0 0.0
  %904 = vmatprep.subr.mxu0 0.0
  %905 = vmatpush1.msra.mxu0 0.0
  %906 = vmatprep.subr.mxu0 0.0
  %907 = vmatpush1.msra.mxu0 0.0
  %908 = vmatprep.subr.mxu0 0.0
  %909 = vmatpush1.msra.mxu0 0.0
  %910 = vmatprep.subr.mxu0 0.0
  %911 = vmatpush1.msra.mxu0 0.0
  %912 = vmatprep.subr.mxu0 0.0
  %913 = vmatpush1.msra.mxu0 0.0
  %914 = vmatprep.subr.mxu0 0.0
  %915 = vmatpush1.msra.mxu0 0.0
  %916 = vmatprep.subr.mxu0 0.0
  %917 = vmatpush1.msra.mxu0 0.0
  %918 = vmatprep.subr.mxu0 0.0
  %919 = vmatpush1.msra.mxu0 0.0
  %920 = vmatprep.subr.mxu0 0.0
  %921 = vmatpush1.msra.mxu0 0.0
  %922 = vmatprep.mubr.f32.mxu0 0.0
  %923 = vmatmul.mubr.f32.gmra.mrb[0].mxu0 %v855
  %v924 = vpop.f32.mrb[0].mxu0
  %v925 = vadd.f32 0.0, %v924
  %v926 = vpop.f32.mrb[0].mxu0
  %927 = vdwg.mxu0
  %v928 = vadd.f32 %v857, %v925
  %v929 = vtanh.pop %v928
  %v930 = vpack.c.bf16 %v929, %v929
  %v931 = vld [vmem:[%s5] sm:$0xf]
  %v932 = vld [vmem:[%s5 + $0x4] sm:$0xf]
  %v933 = vld [vmem:[%s5 + $0x8] sm:$0xf]
  %v934 = vld [vmem:[%s5 + $0xc] sm:$0xf]
  %v935 = vld [vmem:[%s5 + $0x10] sm:$0xf]
  %v936 = vld [vmem:[%s5 + $0x14] sm:$0xf]
  %v937 = vld [vmem:[%s5 + $0x18] sm:$0xf]
  %v938 = vld [vmem:[%s5 + $0x1c] sm:$0xf]
  %v939 = vld [vmem:[%s5 + $0x20] sm:$0xf]
  %v940 = vld [vmem:[%s5 + $0x24] sm:$0xf]
  %v941 = vld [vmem:[%s5 + $0x28] sm:$0xf]
  %v942 = vld [vmem:[%s5 + $0x2c] sm:$0xf]
  %v943 = vld [vmem:[%s5 + $0x30] sm:$0xf]
  %v944 = vld [vmem:[%s5 + $0x34] sm:$0xf]
  %v945 = vld [vmem:[%s5 + $0x38] sm:$0xf]
  %v946 = vld [vmem:[%s5 + $0x3c] sm:$0xf]
  %v947 = vld [vmem:[%s6] sm:$0x1]
  %v949 = vlaneseq
  %v950 = vshrl.u32 %v949, 7
  %v951 = vsub.s32 0, %v950
  %v952 = vrot.slane %v947, %v951
  %v970 = vunpack.c.l.b16 %v931
  %v971 = vunpack.c.l.b16 %v932
  %v972 = vunpack.c.l.b16 %v933
  %v973 = vunpack.c.l.b16 %v934
  %v974 = vunpack.c.l.b16 %v935
  %v975 = vunpack.c.l.b16 %v936
  %v976 = vunpack.c.l.b16 %v937
  %v977 = vunpack.c.l.b16 %v938
  %v978 = vunpack.c.l.b16 %v939
  %v979 = vunpack.c.l.b16 %v940
  %v980 = vunpack.c.l.b16 %v941
  %v981 = vunpack.c.l.b16 %v942
  %v982 = vunpack.c.l.b16 %v943
  %v983 = vunpack.c.l.b16 %v944
  %v984 = vunpack.c.l.b16 %v945
  %v985 = vunpack.c.l.b16 %v946
  %v986 = vpack.c.b16 %v971, %v970
  %v987 = vpack.c.b16 %v973, %v972
  %v988 = vpack.c.b16 %v975, %v974
  %v989 = vpack.c.b16 %v977, %v976
  %v990 = vpack.c.b16 %v979, %v978
  %v991 = vpack.c.b16 %v981, %v980
  %v992 = vpack.c.b16 %v983, %v982
  %v993 = vpack.c.b16 %v985, %v984
  %1002 = vmatprep.subr.bf16.mxu0 0
  %1003 = vmatpush1.bf16.msra.mxu0 %v986
  %1004 = vmatprep.subr.bf16.mxu0 0
  %1005 = vmatpush1.bf16.msra.mxu0 %v987
  %1006 = vmatprep.subr.bf16.mxu0 0
  %1007 = vmatpush1.bf16.msra.mxu0 %v988
  %1008 = vmatprep.subr.bf16.mxu0 0
  %1009 = vmatpush1.bf16.msra.mxu0 %v989
  %1010 = vmatprep.subr.bf16.mxu0 0
  %1011 = vmatpush1.bf16.msra.mxu0 %v990
  %1012 = vmatprep.subr.bf16.mxu0 0
  %1013 = vmatpush1.bf16.msra.mxu0 %v991
  %1014 = vmatprep.subr.bf16.mxu0 0
  %1015 = vmatpush1.bf16.msra.mxu0 %v992
  %1016 = vmatprep.subr.bf16.mxu0 0
  %1017 = vmatpush1.bf16.msra.mxu0 %v993
  %1018 = vmatprep.subr.bf16.mxu0 0
  %1019 = vmatpush1.bf16.msra.mxu0 0
  %1020 = vmatprep.subr.bf16.mxu0 0
  %1021 = vmatpush1.bf16.msra.mxu0 0
  %1022 = vmatprep.subr.bf16.mxu0 0
  %1023 = vmatpush1.bf16.msra.mxu0 0
  %1024 = vmatprep.subr.bf16.mxu0 0
  %1025 = vmatpush1.bf16.msra.mxu0 0
  %1026 = vmatprep.subr.bf16.mxu0 0
  %1027 = vmatpush1.bf16.msra.mxu0 0
  %1028 = vmatprep.subr.bf16.mxu0 0
  %1029 = vmatpush1.bf16.msra.mxu0 0
  %1030 = vmatprep.subr.bf16.mxu0 0
  %1031 = vmatpush1.bf16.msra.mxu0 0
  %1032 = vmatprep.subr.bf16.mxu0 0
  %1033 = vmatpush1.bf16.msra.mxu0 0
  %1034 = vmatprep.mubr.bf16.mxu0 0
  %1035 = vmatmul.mubr.bf16.gmra.mrb[0].mxu0 %v930
  %v1036 = vpop.f32.mrb[0].mxu0
  %v1037 = vadd.f32 %v952, %v1036
  %v1038 = vpop.f32.mrb[0].mxu0
  %v1039 = vpop.f32.mrb[0].mxu0
  %v1040 = vpop.f32.mrb[0].mxu0
  %1041 = vdwg.mxu0
  %1042 = vst [vmem:[%s7] sm:$0xff] %v1037
  // Predicated region
  $region30: #{torch_model_forward.1} parent=0 // pred_check
    _
  $region31: #{torch_model_forward.1} parent=0 // pred_check_branch
    %1044 = sbr.rel (0) target = $region33
  $region32: #{torch_model_forward.1} parent=0 // pred_region
    _
  $region33: #{torch_model_forward.1} parent=0 // pred_fallthru
    _
  // Predicated region
  $region34: #{torch_model_forward.1} parent=0 // pred_check
    _
  $region35: #{torch_model_forward.1} parent=0 // pred_check_branch
    %1046 = sbr.rel (0) target = $region37
  $region36: #{torch_model_forward.1} parent=0 // pred_region
    _
  $region37: #{torch_model_forward.1} parent=0 // pred_fallthru
    _

</llo_original>
